<compile_context>
chip_gen: v6e
topology: v6e:2x2x1
jax: 0.10.0
libtpu: 0.0.40
codegen_flags: <defaults>
</compile_context>

<pallas_src>
import functools

import jax
import jax.numpy as jnp
from jax.experimental import pallas as pl
from jax.experimental.pallas import tpu as pltpu


def _round_up(n: int, m: int) -> int:
    return ((n + m - 1) // m) * m


def _artifact_kernel(x_ref,
                     sumx_ref, sumx2_ref, dsum_ref, gmax_ref, gmin_ref,
                     off_ref, carry_ref,
                     *, true_t: int):
    t = pl.program_id(1)
    nt = pl.num_programs(1)

    x = x_ref[...].astype(jnp.float32)          # (row_tile, t_tile)
    n_rows, tt = x.shape
    rem = true_t % tt                            # static Python int

    first = x[:, 0:1]                            # (rows, 1)
    last = x[:, tt - 1:tt]                       # (rows, 1)

    @pl.when(t == 0)
    def _init():
        # Per-row offset for the one-pass variance (shift-invariant): avoids
        # cancellation when |mean| >> std (dB-scale mel spectrograms).
        off_ref[...] = first
        sumx_ref[...] = jnp.zeros_like(sumx_ref)
        sumx2_ref[...] = jnp.zeros_like(sumx2_ref)
        dsum_ref[...] = jnp.zeros_like(dsum_ref)
        gmax_ref[...] = jnp.full(gmax_ref.shape, -jnp.inf, gmax_ref.dtype)
        gmin_ref[...] = jnp.full(gmin_ref.shape, jnp.inf, gmin_ref.dtype)

    def hot_tile():
        # Unmasked steady-state path (all lanes valid).
        xs = x - off_ref[...]
        sumx_ref[...] += jnp.sum(xs, axis=1, keepdims=True)
        sumx2_ref[...] += jnp.sum(xs * xs, axis=1, keepdims=True)
        gmax_ref[...] = jnp.maximum(gmax_ref[...],
                                    jnp.max(x, axis=1, keepdims=True))
        gmin_ref[...] = jnp.minimum(gmin_ref[...],
                                    jnp.min(x, axis=1, keepdims=True))
        # Temporal diff: roll keeps loads aligned (XLU slot); lane 0 of the rolled
        # array wraps to this tile's last column -> subtract that wrong term and
        # add the true cross-tile boundary term from the carried column instead.
        d = jnp.abs(x - pltpu.roll(x, shift=1, axis=1))
        dsum_ref[...] += jnp.sum(d, axis=1, keepdims=True) - jnp.abs(first - last)

        @pl.when(t > 0)
        def _boundary():
            dsum_ref[...] += jnp.abs(first - carry_ref[...])

        carry_ref[...] = last

    def tail_tile():
        # Masked path — only ever the last (partial) time tile.
        lane = jax.lax.broadcasted_iota(jnp.int32, x.shape, 1)
        valid = lane < rem
        xs = jnp.where(valid, x - off_ref[...], 0.0)
        sumx_ref[...] += jnp.sum(xs, axis=1, keepdims=True)
        sumx2_ref[...] += jnp.sum(xs * xs, axis=1, keepdims=True)
        gmax_ref[...] = jnp.maximum(
            gmax_ref[...],
            jnp.max(jnp.where(valid, x, -jnp.inf), axis=1, keepdims=True))
        gmin_ref[...] = jnp.minimum(
            gmin_ref[...],
            jnp.min(jnp.where(valid, x, jnp.inf), axis=1, keepdims=True))
        d = jnp.abs(x - pltpu.roll(x, shift=1, axis=1))
        dvalid = (lane >= 1) & valid
        dsum_ref[...] += jnp.sum(jnp.where(dvalid, d, 0.0), axis=1, keepdims=True)

        @pl.when(t > 0)
        def _boundary():
            dsum_ref[...] += jnp.abs(first - carry_ref[...])
        # Last tile: carry is never consumed again, no need to write it.

    if rem == 0:
        # T divides t_tile: every tile is a full tile — no masking anywhere.
        hot_tile()
    else:
        @pl.when(t != nt - 1)
        def _hot():
            hot_tile()

        @pl.when(t == nt - 1)
        def _tail():
            tail_tile()


def artifact_detector(mel_spec: jax.Array, *, t_tile: int | None = None) -> jax.Array:
    """Pallas TPU implementation of ArtifactDetector.forward.

    Returns a 0-d float32 device array (caller decides when to sync / .item()).
    """
    B, M, T = mel_spec.shape
    if T < 2:
        raise ValueError("ArtifactDetector requires T >= 2 (torch.std(ddof=1)).")
    R = B * M
    x = mel_spec.reshape(R, T)

    # Row chunking: 2 chunks (when the sublane tile stays 8-aligned) lets v7x's
    # two TensorCores split the streaming reduction via the 'parallel' grid axis.
    n_chunks = 2 if (R % 16 == 0) else 1
    row_tile = R // n_chunks

    if t_tile is None:
        # Byte-budget tile sizing: ~4 MiB per input block -> double-buffered
        # footprint ~8 MiB, comfortably under the 32 MiB scoped-VMEM default of
        # every generation (v7x has only 64 MiB physical VMEM per TC).
        block_budget = 4 << 20
        t_tile = (block_budget // (4 * row_tile)) // 128 * 128
        t_tile = max(128, min(t_tile, _round_up(T, 128)))
    assert t_tile % 128 == 0, "t_tile must be a multiple of 128"

    n_tiles = pl.cdiv(T, t_tile)
    block_bytes = 4 * row_tile * t_tile
    vmem_limit = max(16 << 20, 2 * block_bytes + (2 << 20))

    kernel = functools.partial(_artifact_kernel, true_t=T)

    part = jax.ShapeDtypeStruct((R, 1), jnp.float32)
    out_specs = tuple(
        pl.BlockSpec((row_tile, 1), lambda r, t: (r, 0)) for _ in range(5))

    sumx, sumx2, dsum, gmax, gmin = pl.pallas_call(
        kernel,
        out_shape=(part, part, part, part, part),
        grid_spec=pltpu.PrefetchScalarGridSpec(
            num_scalar_prefetch=0,
            grid=(n_chunks, n_tiles),
            in_specs=[pl.BlockSpec((row_tile, t_tile), lambda r, t: (r, t))],
            out_specs=out_specs,
            scratch_shapes=[
                pltpu.VMEM((row_tile, 1), jnp.float32),   # per-row variance offset
                pltpu.VMEM((row_tile, 1), jnp.float32),   # carry: prev tile's last col
            ],
        ),
        compiler_params=pltpu.CompilerParams(
            dimension_semantics=("parallel", "arbitrary"),
            vmem_limit_bytes=vmem_limit,
        ),
        cost_estimate=pl.CostEstimate(
            flops=10 * R * T,
            transcendentals=0,
            bytes_accessed=4 * R * T + 5 * 4 * R,
        ),
    )(x)

    # Tiny JAX epilogue: combine per-row partials into the scalar artifact score.
    Tf = jnp.float32(T)
    sx = sumx[:, 0]
    sx2 = sumx2[:, 0]
    var = (sx2 - sx * sx / Tf) / (Tf - 1.0)              # ddof=1, shift-invariant
    spectral_std = jnp.sqrt(jnp.maximum(var, 0.0))
    stability_score = 1.0 - jnp.clip(jnp.mean(spectral_std) * 2.0, 0.0, 1.0)

    click_score = 1.0 - jnp.clip(
        jnp.sum(dsum) / jnp.float32(R * (T - 1)) * 10.0, 0.0, 1.0)

    dynamic_range = jnp.max(gmax) - jnp.min(gmin)
    range_score = jnp.clip(dynamic_range / 10.0, 0.0, 1.0)

    # TODO(synk): torch returns .item() (host float); we return a device scalar and
    # let the caller decide when to sync.
    return (click_score + stability_score + range_score) / 3.0


def _reference(x: jax.Array) -> jax.Array:
    """Pure-JAX reference mirroring the PyTorch forward."""
    x = x.astype(jnp.float32)
    diff = jnp.abs(x[:, :, 1:] - x[:, :, :-1])
    click_score = 1.0 - jnp.clip(jnp.mean(diff) * 10.0, 0.0, 1.0)
    spectral_std = jnp.std(x, axis=2, ddof=1)
    stability_score = 1.0 - jnp.clip(jnp.mean(spectral_std) * 2.0, 0.0, 1.0)
    dynamic_range = jnp.max(x) - jnp.min(x)
    range_score = jnp.clip(dynamic_range / 10.0, 0.0, 1.0)
    return (click_score + stability_score + range_score) / 3.0


if __name__ == "__main__":
    # ArtifactDetector has no learnable parameters — nothing to initialize.
    key = jax.random.PRNGKey(0)
    k1, k2, k3 = jax.random.split(key, 3)

    # Scale down so none of the three terms saturate their clamp (exercises the
    # full numerical path, not just the clipped branches).

    # 1) Multi-tile: hot tiles + masked tail + cross-tile carry + 2 row chunks.
    B, M, T = 2, 8, 300
    mel_spec = jax.random.normal(k1, (B, M, T), dtype=jnp.float32) * 0.05
    score = jax.block_until_ready(artifact_detector(mel_spec, t_tile=128))
    ref = jax.block_until_ready(_reference(mel_spec))
    assert abs(float(score) - float(ref)) < 5e-5, f"mismatch: pallas={score} ref={ref}"
    assert 0.0 <= float(score) <= 1.0

    # 2) Default (byte-budget) tiling on a tiny input: single partial tile.
    small = jax.random.normal(k2, (2, 8, 16), dtype=jnp.float32) * 0.05
    score2 = jax.block_until_ready(artifact_detector(small))
    ref2 = jax.block_until_ready(_reference(small))
    assert abs(float(score2) - float(ref2)) < 5e-5, f"mismatch: pallas={score2} ref={ref2}"

    # 3) rem == 0 pure hot path, rows not a multiple of 8 (full-extent sublane block).
    odd = jax.random.normal(k3, (1, 5, 256), dtype=jnp.float32) * 0.05
    score3 = jax.block_until_ready(artifact_detector(odd, t_tile=128))
    ref3 = jax.block_until_ready(_reference(odd))
    assert abs(float(score3) - float(ref3)) < 5e-5, f"mismatch: pallas={score3} ref={ref3}"

    print("KERNEL_OK")
</pallas_src>

<mosaic_0001>
module attributes {stable_mosaic.version = 11 : i64} {
  func.func @_artifact_kernel(%arg0: i32, %arg1: i32, %arg2: memref<8x128xf32, #tpu.memory_space<vmem>>, %arg3: memref<8x1xf32, #tpu.memory_space<vmem>>, %arg4: memref<8x1xf32, #tpu.memory_space<vmem>>, %arg5: memref<8x1xf32, #tpu.memory_space<vmem>>, %arg6: memref<8x1xf32, #tpu.memory_space<vmem>>, %arg7: memref<8x1xf32, #tpu.memory_space<vmem>>, %arg8: memref<8x1xf32, #tpu.memory_space<vmem>>, %arg9: memref<8x1xf32, #tpu.memory_space<vmem>>) attributes {dimension_semantics = [#tpu.dimension_semantics<parallel>, #tpu.dimension_semantics<arbitrary>], iteration_bounds = array<i64: 2, 3>, scalar_prefetch = 0 : i64, scratch_operands = 2 : i64, tpu.core_type = #tpu.core_type<tc>, window_params = [{transform_indices = @transform_0, window_bounds = array<i64: 8, 128>}, {transform_indices = @transform_1, window_bounds = array<i64: 8, 1>}, {transform_indices = @transform_2, window_bounds = array<i64: 8, 1>}, {transform_indices = @transform_3, window_bounds = array<i64: 8, 1>}, {transform_indices = @transform_4, window_bounds = array<i64: 8, 1>}, {transform_indices = @transform_5, window_bounds = array<i64: 8, 1>}]} {
    %c0 = arith.constant 0 : index
    %c0_0 = arith.constant 0 : index
    %0 = vector.load %arg2[%c0, %c0_0] : memref<8x128xf32, #tpu.memory_space<vmem>>, vector<8x128xf32>
    %1 = vector.extract_strided_slice %0 {offsets = [0, 0], sizes = [8, 1], strides = [1, 1]} : vector<8x128xf32> to vector<8x1xf32>
    %2 = vector.extract_strided_slice %0 {offsets = [0, 127], sizes = [8, 1], strides = [1, 1]} : vector<8x128xf32> to vector<8x1xf32>
    %c0_i32 = arith.constant 0 : i32
    %3 = arith.cmpi eq, %arg1, %c0_i32 : i32
    %4 = arith.extui %3 : i1 to i32
    %c0_i32_1 = arith.constant 0 : i32
    %5 = arith.cmpi ne, %4, %c0_i32_1 : i32
    scf.if %5 {
      %c0_5 = arith.constant 0 : index
      %c0_6 = arith.constant 0 : index
      %12 = vector.load %arg8[%c0_5, %c0_6] : memref<8x1xf32, #tpu.memory_space<vmem>>, vector<8x1xf32>
      tpu.vector_store %arg8[%c0_5, %c0_6], %1 {strides = array<i32>} : memref<8x1xf32, #tpu.memory_space<vmem>>, vector<8x1xf32>,
      %cst = arith.constant 0.000000e+00 : f32
      %13 = vector.broadcast %cst : f32 to vector<8x1xf32>
      %c0_7 = arith.constant 0 : index
      %c0_8 = arith.constant 0 : index
      %14 = vector.load %arg3[%c0_7, %c0_8] : memref<8x1xf32, #tpu.memory_space<vmem>>, vector<8x1xf32>
      tpu.vector_store %arg3[%c0_7, %c0_8], %13 {strides = array<i32>} : memref<8x1xf32, #tpu.memory_space<vmem>>, vector<8x1xf32>,
      %cst_9 = arith.constant 0.000000e+00 : f32
      %15 = vector.broadcast %cst_9 : f32 to vector<8x1xf32>
      %c0_10 = arith.constant 0 : index
      %c0_11 = arith.constant 0 : index
      %16 = vector.load %arg4[%c0_10, %c0_11] : memref<8x1xf32, #tpu.memory_space<vmem>>, vector<8x1xf32>
      tpu.vector_store %arg4[%c0_10, %c0_11], %15 {strides = array<i32>} : memref<8x1xf32, #tpu.memory_space<vmem>>, vector<8x1xf32>,
      %cst_12 = arith.constant 0.000000e+00 : f32
      %17 = vector.broadcast %cst_12 : f32 to vector<8x1xf32>
      %c0_13 = arith.constant 0 : index
      %c0_14 = arith.constant 0 : index
      %18 = vector.load %arg5[%c0_13, %c0_14] : memref<8x1xf32, #tpu.memory_space<vmem>>, vector<8x1xf32>
      tpu.vector_store %arg5[%c0_13, %c0_14], %17 {strides = array<i32>} : memref<8x1xf32, #tpu.memory_space<vmem>>, vector<8x1xf32>,
      %cst_15 = arith.constant 0xFF800000 : f32
      %19 = vector.broadcast %cst_15 : f32 to vector<8x1xf32>
      %c0_16 = arith.constant 0 : index
      %c0_17 = arith.constant 0 : index
      %20 = vector.load %arg6[%c0_16, %c0_17] : memref<8x1xf32, #tpu.memory_space<vmem>>, vector<8x1xf32>
      tpu.vector_store %arg6[%c0_16, %c0_17], %19 {strides = array<i32>} : memref<8x1xf32, #tpu.memory_space<vmem>>, vector<8x1xf32>,
      %cst_18 = arith.constant 0x7F800000 : f32
      %21 = vector.broadcast %cst_18 : f32 to vector<8x1xf32>
      %c0_19 = arith.constant 0 : index
      %c0_20 = arith.constant 0 : index
      %22 = vector.load %arg7[%c0_19, %c0_20] : memref<8x1xf32, #tpu.memory_space<vmem>>, vector<8x1xf32>
      tpu.vector_store %arg7[%c0_19, %c0_20], %21 {strides = array<i32>} : memref<8x1xf32, #tpu.memory_space<vmem>>, vector<8x1xf32>,
    } else {
    }
    %c2_i32 = arith.constant 2 : i32
    %6 = arith.cmpi ne, %arg1, %c2_i32 : i32
    %7 = arith.extui %6 : i1 to i32
    %c0_i32_2 = arith.constant 0 : i32
    %8 = arith.cmpi ne, %7, %c0_i32_2 : i32
    scf.if %8 {
      %c0_5 = arith.constant 0 : index
      %c0_6 = arith.constant 0 : index
      %12 = vector.load %arg8[%c0_5, %c0_6] : memref<8x1xf32, #tpu.memory_space<vmem>>, vector<8x1xf32>
      %13 = vector.broadcast %12 : vector<8x1xf32> to vector<8x128xf32>
      %14 = arith.subf %0, %13 : vector<8x128xf32>
      %c0_7 = arith.constant 0 : index
      %c0_8 = arith.constant 0 : index
      %15 = vector.load %arg3[%c0_7, %c0_8] : memref<8x1xf32, #tpu.memory_space<vmem>>, vector<8x1xf32>
      %cst = arith.constant dense<0.000000e+00> : vector<8xf32>
      %16 = vector.multi_reduction <add>, %14, %cst [1] : vector<8x128xf32> to vector<8xf32>
      %17 = vector.shape_cast %16 : vector<8xf32> to vector<8x1xf32>
      %18 = arith.addf %15, %17 : vector<8x1xf32>
      %c0_9 = arith.constant 0 : index
      %c0_10 = arith.constant 0 : index
      %19 = vector.load %arg3[%c0_9, %c0_10] : memref<8x1xf32, #tpu.memory_space<vmem>>, vector<8x1xf32>
      tpu.vector_store %arg3[%c0_9, %c0_10], %18 {strides = array<i32>} : memref<8x1xf32, #tpu.memory_space<vmem>>, vector<8x1xf32>,
      %c0_11 = arith.constant 0 : index
      %c0_12 = arith.constant 0 : index
      %20 = vector.load %arg4[%c0_11, %c0_12] : memref<8x1xf32, #tpu.memory_space<vmem>>, vector<8x1xf32>
      %21 = arith.mulf %14, %14 : vector<8x128xf32>
      %cst_13 = arith.constant dense<0.000000e+00> : vector<8xf32>
      %22 = vector.multi_reduction <add>, %21, %cst_13 [1] : vector<8x128xf32> to vector<8xf32>
      %23 = vector.shape_cast %22 : vector<8xf32> to vector<8x1xf32>
      %24 = arith.addf %20, %23 : vector<8x1xf32>
      %c0_14 = arith.constant 0 : index
      %c0_15 = arith.constant 0 : index
      %25 = vector.load %arg4[%c0_14, %c0_15] : memref<8x1xf32, #tpu.memory_space<vmem>>, vector<8x1xf32>
      tpu.vector_store %arg4[%c0_14, %c0_15], %24 {strides = array<i32>} : memref<8x1xf32, #tpu.memory_space<vmem>>, vector<8x1xf32>,
      %c0_16 = arith.constant 0 : index
      %c0_17 = arith.constant 0 : index
      %26 = vector.load %arg6[%c0_16, %c0_17] : memref<8x1xf32, #tpu.memory_space<vmem>>, vector<8x1xf32>
      %cst_18 = arith.constant dense<0xFF800000> : vector<8xf32>
      %27 = vector.multi_reduction <maximumf>, %0, %cst_18 [1] : vector<8x128xf32> to vector<8xf32>
      %28 = vector.shape_cast %27 : vector<8xf32> to vector<8x1xf32>
      %29 = arith.maximumf %26, %28 : vector<8x1xf32>
      %c0_19 = arith.constant 0 : index
      %c0_20 = arith.constant 0 : index
      %30 = vector.load %arg6[%c0_19, %c0_20] : memref<8x1xf32, #tpu.memory_space<vmem>>, vector<8x1xf32>
      tpu.vector_store %arg6[%c0_19, %c0_20], %29 {strides = array<i32>} : memref<8x1xf32, #tpu.memory_space<vmem>>, vector<8x1xf32>,
      %c0_21 = arith.constant 0 : index
      %c0_22 = arith.constant 0 : index
      %31 = vector.load %arg7[%c0_21, %c0_22] : memref<8x1xf32, #tpu.memory_space<vmem>>, vector<8x1xf32>
      %cst_23 = arith.constant dense<0x7F800000> : vector<8xf32>
      %32 = vector.multi_reduction <minimumf>, %0, %cst_23 [1] : vector<8x128xf32> to vector<8xf32>
      %33 = vector.shape_cast %32 : vector<8xf32> to vector<8x1xf32>
      %34 = arith.minimumf %31, %33 : vector<8x1xf32>
      %c0_24 = arith.constant 0 : index
      %c0_25 = arith.constant 0 : index
      %35 = vector.load %arg7[%c0_24, %c0_25] : memref<8x1xf32, #tpu.memory_space<vmem>>, vector<8x1xf32>
      tpu.vector_store %arg7[%c0_24, %c0_25], %34 {strides = array<i32>} : memref<8x1xf32, #tpu.memory_space<vmem>>, vector<8x1xf32>,
      %c1_i32 = arith.constant 1 : i32
      %36 = tpu.dynamic_rotate %0 by %c1_i32 dim 1 : vector<8x128xf32>, i32 -> vector<8x128xf32>
      %37 = arith.subf %0, %36 : vector<8x128xf32>
      %38 = math.absf %37 : vector<8x128xf32>
      %c0_26 = arith.constant 0 : index
      %c0_27 = arith.constant 0 : index
      %39 = vector.load %arg5[%c0_26, %c0_27] : memref<8x1xf32, #tpu.memory_space<vmem>>, vector<8x1xf32>
      %cst_28 = arith.constant dense<0.000000e+00> : vector<8xf32>
      %40 = vector.multi_reduction <add>, %38, %cst_28 [1] : vector<8x128xf32> to vector<8xf32>
      %41 = vector.shape_cast %40 : vector<8xf32> to vector<8x1xf32>
      %42 = arith.subf %1, %2 : vector<8x1xf32>
      %43 = math.absf %42 : vector<8x1xf32>
      %44 = arith.subf %41, %43 : vector<8x1xf32>
      %45 = arith.addf %39, %44 : vector<8x1xf32>
      %c0_29 = arith.constant 0 : index
      %c0_30 = arith.constant 0 : index
      %46 = vector.load %arg5[%c0_29, %c0_30] : memref<8x1xf32, #tpu.memory_space<vmem>>, vector<8x1xf32>
      tpu.vector_store %arg5[%c0_29, %c0_30], %45 {strides = array<i32>} : memref<8x1xf32, #tpu.memory_space<vmem>>, vector<8x1xf32>,
      %c0_i32_31 = arith.constant 0 : i32
      %47 = arith.cmpi sgt, %arg1, %c0_i32_31 : i32
      %48 = arith.extui %47 : i1 to i32
      %c0_i32_32 = arith.constant 0 : i32
      %49 = arith.cmpi ne, %48, %c0_i32_32 : i32
      scf.if %49 {
        %c0_35 = arith.constant 0 : index
        %c0_36 = arith.constant 0 : index
        %51 = vector.load %arg5[%c0_35, %c0_36] : memref<8x1xf32, #tpu.memory_space<vmem>>, vector<8x1xf32>
        %c0_37 = arith.constant 0 : index
        %c0_38 = arith.constant 0 : index
        %52 = vector.load %arg9[%c0_37, %c0_38] : memref<8x1xf32, #tpu.memory_space<vmem>>, vector<8x1xf32>
        %53 = arith.subf %1, %52 : vector<8x1xf32>
        %54 = math.absf %53 : vector<8x1xf32>
        %55 = arith.addf %51, %54 : vector<8x1xf32>
        %c0_39 = arith.constant 0 : index
        %c0_40 = arith.constant 0 : index
        %56 = vector.load %arg5[%c0_39, %c0_40] : memref<8x1xf32, #tpu.memory_space<vmem>>, vector<8x1xf32>
        tpu.vector_store %arg5[%c0_39, %c0_40], %55 {strides = array<i32>} : memref<8x1xf32, #tpu.memory_space<vmem>>, vector<8x1xf32>,
      } else {
      }
      %c0_33 = arith.constant 0 : index
      %c0_34 = arith.constant 0 : index
      %50 = vector.load %arg9[%c0_33, %c0_34] : memref<8x1xf32, #tpu.memory_space<vmem>>, vector<8x1xf32>
      tpu.vector_store %arg9[%c0_33, %c0_34], %2 {strides = array<i32>} : memref<8x1xf32, #tpu.memory_space<vmem>>, vector<8x1xf32>,
    } else {
    }
    %c2_i32_3 = arith.constant 2 : i32
    %9 = arith.cmpi eq, %arg1, %c2_i32_3 : i32
    %10 = arith.extui %9 : i1 to i32
    %c0_i32_4 = arith.constant 0 : i32
    %11 = arith.cmpi ne, %10, %c0_i32_4 : i32
    scf.if %11 {
      %12 = tpu.iota {dimensions = array<i32: 1>} : vector<8x128xi32>
      %c44_i32 = arith.constant 44 : i32
      %13 = vector.broadcast %c44_i32 : i32 to vector<8x128xi32>
      %14 = arith.cmpi slt, %12, %13 : vector<8x128xi32>
      %c0_5 = arith.constant 0 : index
      %c0_6 = arith.constant 0 : index
      %15 = vector.load %arg8[%c0_5, %c0_6] : memref<8x1xf32, #tpu.memory_space<vmem>>, vector<8x1xf32>
      %16 = vector.broadcast %15 : vector<8x1xf32> to vector<8x128xf32>
      %17 = arith.subf %0, %16 : vector<8x128xf32>
      %cst = arith.constant 0.000000e+00 : f32
      %18 = vector.broadcast %cst : f32 to vector<8x128xf32>
      %19 = arith.select %14, %17, %18 : vector<8x128xi1>, vector<8x128xf32>
      %c0_7 = arith.constant 0 : index
      %c0_8 = arith.constant 0 : index
      %20 = vector.load %arg3[%c0_7, %c0_8] : memref<8x1xf32, #tpu.memory_space<vmem>>, vector<8x1xf32>
      %cst_9 = arith.constant dense<0.000000e+00> : vector<8xf32>
      %21 = vector.multi_reduction <add>, %19, %cst_9 [1] : vector<8x128xf32> to vector<8xf32>
      %22 = vector.shape_cast %21 : vector<8xf32> to vector<8x1xf32>
      %23 = arith.addf %20, %22 : vector<8x1xf32>
      %c0_10 = arith.constant 0 : index
      %c0_11 = arith.constant 0 : index
      %24 = vector.load %arg3[%c0_10, %c0_11] : memref<8x1xf32, #tpu.memory_space<vmem>>, vector<8x1xf32>
      tpu.vector_store %arg3[%c0_10, %c0_11], %23 {strides = array<i32>} : memref<8x1xf32, #tpu.memory_space<vmem>>, vector<8x1xf32>,
      %c0_12 = arith.constant 0 : index
      %c0_13 = arith.constant 0 : index
      %25 = vector.load %arg4[%c0_12, %c0_13] : memref<8x1xf32, #tpu.memory_space<vmem>>, vector<8x1xf32>
      %26 = arith.mulf %19, %19 : vector<8x128xf32>
      %cst_14 = arith.constant dense<0.000000e+00> : vector<8xf32>
      %27 = vector.multi_reduction <add>, %26, %cst_14 [1] : vector<8x128xf32> to vector<8xf32>
      %28 = vector.shape_cast %27 : vector<8xf32> to vector<8x1xf32>
      %29 = arith.addf %25, %28 : vector<8x1xf32>
      %c0_15 = arith.constant 0 : index
      %c0_16 = arith.constant 0 : index
      %30 = vector.load %arg4[%c0_15, %c0_16] : memref<8x1xf32, #tpu.memory_space<vmem>>, vector<8x1xf32>
      tpu.vector_store %arg4[%c0_15, %c0_16], %29 {strides = array<i32>} : memref<8x1xf32, #tpu.memory_space<vmem>>, vector<8x1xf32>,
      %c0_17 = arith.constant 0 : index
      %c0_18 = arith.constant 0 : index
      %31 = vector.load %arg6[%c0_17, %c0_18] : memref<8x1xf32, #tpu.memory_space<vmem>>, vector<8x1xf32>
      %cst_19 = arith.constant 0xFF800000 : f32
      %32 = vector.broadcast %cst_19 : f32 to vector<8x128xf32>
      %33 = arith.select %14, %0, %32 : vector<8x128xi1>, vector<8x128xf32>
      %cst_20 = arith.constant dense<0xFF800000> : vector<8xf32>
      %34 = vector.multi_reduction <maximumf>, %33, %cst_20 [1] : vector<8x128xf32> to vector<8xf32>
      %35 = vector.shape_cast %34 : vector<8xf32> to vector<8x1xf32>
      %36 = arith.maximumf %31, %35 : vector<8x1xf32>
      %c0_21 = arith.constant 0 : index
      %c0_22 = arith.constant 0 : index
      %37 = vector.load %arg6[%c0_21, %c0_22] : memref<8x1xf32, #tpu.memory_space<vmem>>, vector<8x1xf32>
      tpu.vector_store %arg6[%c0_21, %c0_22], %36 {strides = array<i32>} : memref<8x1xf32, #tpu.memory_space<vmem>>, vector<8x1xf32>,
      %c0_23 = arith.constant 0 : index
      %c0_24 = arith.constant 0 : index
      %38 = vector.load %arg7[%c0_23, %c0_24] : memref<8x1xf32, #tpu.memory_space<vmem>>, vector<8x1xf32>
      %cst_25 = arith.constant 0x7F800000 : f32
      %39 = vector.broadcast %cst_25 : f32 to vector<8x128xf32>
      %40 = arith.select %14, %0, %39 : vector<8x128xi1>, vector<8x128xf32>
      %cst_26 = arith.constant dense<0x7F800000> : vector<8xf32>
      %41 = vector.multi_reduction <minimumf>, %40, %cst_26 [1] : vector<8x128xf32> to vector<8xf32>
      %42 = vector.shape_cast %41 : vector<8xf32> to vector<8x1xf32>
      %43 = arith.minimumf %38, %42 : vector<8x1xf32>
      %c0_27 = arith.constant 0 : index
      %c0_28 = arith.constant 0 : index
      %44 = vector.load %arg7[%c0_27, %c0_28] : memref<8x1xf32, #tpu.memory_space<vmem>>, vector<8x1xf32>
      tpu.vector_store %arg7[%c0_27, %c0_28], %43 {strides = array<i32>} : memref<8x1xf32, #tpu.memory_space<vmem>>, vector<8x1xf32>,
      %c1_i32 = arith.constant 1 : i32
      %45 = tpu.dynamic_rotate %0 by %c1_i32 dim 1 : vector<8x128xf32>, i32 -> vector<8x128xf32>
      %46 = arith.subf %0, %45 : vector<8x128xf32>
      %47 = math.absf %46 : vector<8x128xf32>
      %c1_i32_29 = arith.constant 1 : i32
      %48 = vector.broadcast %c1_i32_29 : i32 to vector<8x128xi32>
      %49 = arith.cmpi sge, %12, %48 : vector<8x128xi32>
      %50 = arith.andi %49, %14 : vector<8x128xi1>
      %c0_30 = arith.constant 0 : index
      %c0_31 = arith.constant 0 : index
      %51 = vector.load %arg5[%c0_30, %c0_31] : memref<8x1xf32, #tpu.memory_space<vmem>>, vector<8x1xf32>
      %cst_32 = arith.constant 0.000000e+00 : f32
      %52 = vector.broadcast %cst_32 : f32 to vector<8x128xf32>
      %53 = arith.select %50, %47, %52 : vector<8x128xi1>, vector<8x128xf32>
      %cst_33 = arith.constant dense<0.000000e+00> : vector<8xf32>
      %54 = vector.multi_reduction <add>, %53, %cst_33 [1] : vector<8x128xf32> to vector<8xf32>
      %55 = vector.shape_cast %54 : vector<8xf32> to vector<8x1xf32>
      %56 = arith.addf %51, %55 : vector<8x1xf32>
      %c0_34 = arith.constant 0 : index
      %c0_35 = arith.constant 0 : index
      %57 = vector.load %arg5[%c0_34, %c0_35] : memref<8x1xf32, #tpu.memory_space<vmem>>, vector<8x1xf32>
      tpu.vector_store %arg5[%c0_34, %c0_35], %56 {strides = array<i32>} : memref<8x1xf32, #tpu.memory_space<vmem>>, vector<8x1xf32>,
      %c0_i32_36 = arith.constant 0 : i32
      %58 = arith.cmpi sgt, %arg1, %c0_i32_36 : i32
      %59 = arith.extui %58 : i1 to i32
      %c0_i32_37 = arith.constant 0 : i32
      %60 = arith.cmpi ne, %59, %c0_i32_37 : i32
      scf.if %60 {
        %c0_38 = arith.constant 0 : index
        %c0_39 = arith.constant 0 : index
        %61 = vector.load %arg5[%c0_38, %c0_39] : memref<8x1xf32, #tpu.memory_space<vmem>>, vector<8x1xf32>
        %c0_40 = arith.constant 0 : index
        %c0_41 = arith.constant 0 : index
        %62 = vector.load %arg9[%c0_40, %c0_41] : memref<8x1xf32, #tpu.memory_space<vmem>>, vector<8x1xf32>
        %63 = arith.subf %1, %62 : vector<8x1xf32>
        %64 = math.absf %63 : vector<8x1xf32>
        %65 = arith.addf %61, %64 : vector<8x1xf32>
        %c0_42 = arith.constant 0 : index
        %c0_43 = arith.constant 0 : index
        %66 = vector.load %arg5[%c0_42, %c0_43] : memref<8x1xf32, #tpu.memory_space<vmem>>, vector<8x1xf32>
        tpu.vector_store %arg5[%c0_42, %c0_43], %65 {strides = array<i32>} : memref<8x1xf32, #tpu.memory_space<vmem>>, vector<8x1xf32>,
      } else {
      }
    } else {
    }
    return
  }
  func.func @transform_0(%arg0: i32, %arg1: i32) -> (i32, i32) {
    %c0_i32 = arith.constant 0 : i32
    return %arg0, %arg1 : i32, i32
  }
  func.func @transform_1(%arg0: i32, %arg1: i32) -> (i32, i32) {
    %c0_i32 = arith.constant 0 : i32
    %c0_i32_0 = arith.constant 0 : i32
    return %arg0, %c0_i32 : i32, i32
  }
  func.func @transform_2(%arg0: i32, %arg1: i32) -> (i32, i32) {
    %c0_i32 = arith.constant 0 : i32
    %c0_i32_0 = arith.constant 0 : i32
    return %arg0, %c0_i32 : i32, i32
  }
  func.func @transform_3(%arg0: i32, %arg1: i32) -> (i32, i32) {
    %c0_i32 = arith.constant 0 : i32
    %c0_i32_0 = arith.constant 0 : i32
    return %arg0, %c0_i32 : i32, i32
  }
  func.func @transform_4(%arg0: i32, %arg1: i32) -> (i32, i32) {
    %c0_i32 = arith.constant 0 : i32
    %c0_i32_0 = arith.constant 0 : i32
    return %arg0, %c0_i32 : i32, i32
  }
  func.func @transform_5(%arg0: i32, %arg1: i32) -> (i32, i32) {
    %c0_i32 = arith.constant 0 : i32
    %c0_i32_0 = arith.constant 0 : i32
    return %arg0, %c0_i32 : i32, i32
  }
}

</mosaic_0001>

<llo_original>
// kernel: tpu_custom_call.1
$region0: #{tpu_custom_call.1}
  #allocation0 [shape = 'u32[]', space=smem, size = 0x4, offset = 0x4, fixed_abs, tag = 'smem constant byte address 0x4 - core index']
  #allocation1 [shape = 'u32[144,128]{1,0:T(1,128)}', space=vmem, size = 0x12000, scoped, tag = 'internal scratch']
  #allocation2 [shape = 'f32[8,1]{1,0:T(8,128)}', space=vmem, size = 0x1000, scoped, tag = 'scratch operand']
  #allocation3 [shape = 'f32[8,1]{1,0:T(8,128)}', space=vmem, size = 0x1000, scoped, tag = 'scratch operand']
  %s0 = inlined_call_operand.hbm [shape: f32[16,300], index: 0, kind: input, shape index: {}]
  %s1 = inlined_call_operand.vmem [shape: f32[16,1], index: 1, kind: output, shape index: {0}]
  %s2 = inlined_call_operand.vmem [shape: f32[16,1], index: 2, kind: output, shape index: {1}]
  %s3 = inlined_call_operand.vmem [shape: f32[16,1], index: 3, kind: output, shape index: {2}]
  %s4 = inlined_call_operand.vmem [shape: f32[16,1], index: 4, kind: output, shape index: {3}]
  %s5 = inlined_call_operand.vmem [shape: f32[16,1], index: 5, kind: output, shape index: {4}]
  %6 = xla_tuple %s1, %s2, %s3, %s4, %s5
  %s7 = sld [smem:[#allocation0]]
  $region93: #{tpu_custom_call.1} parent=0
    _
  %s9 = ssub.s32 1, %s7
  %s10 = scalar_select 0, %s9, %s7
  $region1: #{tpu_custom_call.1} parent=0
    #allocation4 [shape = 'u8[8192]{0}', space=vmem, size = 0x2000, scoped, tag = 'input window, operand 0']
    #allocation5 [shape = 's32[2]{0}', space=sflag, size = 0x8, scoped, tag = 'scoped memory for tpu_custom_call.1']
    %11 = vsyncpa [#allocation5], 0
    %s12 = scalar_lea.sflag [#allocation5], 1
    %13 = vsyncpa %s12, 0
    loop: start=0, step=1, limit=8
    $region2: #{tpu_custom_call.1} parent=1 // loop_pre_header
      _
    $region3: #{tpu_custom_call.1} parent=1 // loop_header
      %s15 = sphi 0, %s19
      %p16 = scmp.ge.s32.totalorder %s15, 8
      %s22 = sphi 0, %s34
      %s23 = sphi 0, %s30
      %s24 = sphi 0, %s22
      %s25 = sphi 0, %s23
      %s26 = sphi 0, %s24
      %s27 = sphi 0, %s25
      %s39 = sphi 0, %s41
      %s42 = sphi 0, %s39
      %s43 = sphi 0, %s42
      %s59 = sphi 0, %s43
      %s65 = sphi 0, %s67
      %s68 = sphi 0, %s65
      %s69 = sphi 0, %s68
      %s85 = sphi 0, %s69
      %s91 = sphi 0, %s93
      %s94 = sphi 0, %s91
      %s95 = sphi 0, %s94
      %s111 = sphi 0, %s95
      %s117 = sphi 0, %s119
      %s120 = sphi 0, %s117
      %s121 = sphi 0, %s120
      %s137 = sphi 0, %s121
      %s143 = sphi 0, %s145
      %s146 = sphi 0, %s143
      %s147 = sphi 0, %s146
      %s163 = sphi 0, %s147
      %s169 = sphi 0, %s171
      %s172 = sphi 0, %s169
      %s173 = sphi 0, %s172
      %s189 = sphi 0, %s173
    $region4: #{tpu_custom_call.1} parent=1 // loop_header_branch
      %18 = sbr.rel (%p16) target = $region8
    $region5: #{tpu_custom_call.1} parent=1 // loop_body
      %s20 = ssub.s32 %s15, 1
      %s21 = ssub.s32 %s15, 2
      %s28 = sadd.s32 1, %s23
      %p29 = scmp.ge.s32.totalorder %s28, 3
      %s30 = scalar_select %p29, 0, %s28
      %s31 = sadd.s32 1, %s22
      %s32 = scalar_select %p29, %s31, %s22
      %p33 = scmp.ge.s32.totalorder %s32, 2
      %s34 = scalar_select %p33, 0, %s32
      %s35 = ssub.s32 %s22, %s34
      %s36 = ssub.s32 %s23, %s30
      %s37 = sor.u32 %s35, %s36
      %p38 = scmp.eq.s32.totalorder %s37, 0
      %s40 = sadd.s32 %s39, 1
      %s41 = scalar_select %p38, %s39, %s40
      %p44 = pneg %p38
      %p45 = scmp.eq.s32.totalorder %s15, 5
      %p46 = por %p44, %p45
      %p47 = scmp.ne.s32.totalorder %s39, %s42
      %p48 = scmp.eq.s32.totalorder %s15, 0
      %p49 = por %p47, %p48
      %p50 = scmp.ne.s32.totalorder %s39, %s42
      %p51 = scmp.eq.s32.totalorder %s20, 5
      %p52 = por %p50, %p51
      %p53 = scmp.ne.s32.totalorder %s42, %s43
      %p54 = scmp.eq.s32.totalorder %s20, 0
      %p55 = por %p53, %p54
      %p56 = scmp.ne.s32.totalorder %s42, %s43
      %p57 = scmp.eq.s32.totalorder %s21, 5
      %p58 = por %p56, %p57
      %p60 = scmp.ne.s32.totalorder %s43, %s59
      %p61 = scmp.eq.s32.totalorder %s21, 0
      %p62 = por %p60, %p61
      %s63 = ssub.s32 %s22, %s34
      %p64 = scmp.eq.s32.totalorder %s63, 0
      %s66 = sadd.s32 %s65, 1
      %s67 = scalar_select %p64, %s65, %s66
      %p70 = pneg %p64
      %p71 = scmp.eq.s32.totalorder %s15, 5
      %p72 = por %p70, %p71
      %p73 = scmp.ne.s32.totalorder %s65, %s68
      %p74 = scmp.eq.s32.totalorder %s15, 0
      %p75 = por %p73, %p74
      %p76 = scmp.ne.s32.totalorder %s65, %s68
      %p77 = scmp.eq.s32.totalorder %s20, 5
      %p78 = por %p76, %p77
      %p79 = scmp.ne.s32.totalorder %s68, %s69
      %p80 = scmp.eq.s32.totalorder %s20, 0
      %p81 = por %p79, %p80
      %p82 = scmp.ne.s32.totalorder %s68, %s69
      %p83 = scmp.eq.s32.totalorder %s21, 5
      %p84 = por %p82, %p83
      %p86 = scmp.ne.s32.totalorder %s69, %s85
      %p87 = scmp.eq.s32.totalorder %s21, 0
      %p88 = por %p86, %p87
      %s89 = ssub.s32 %s22, %s34
      %p90 = scmp.eq.s32.totalorder %s89, 0
      %s92 = sadd.s32 %s91, 1
      %s93 = scalar_select %p90, %s91, %s92
      %p96 = pneg %p90
      %p97 = scmp.eq.s32.totalorder %s15, 5
      %p98 = por %p96, %p97
      %p99 = scmp.ne.s32.totalorder %s91, %s94
      %p100 = scmp.eq.s32.totalorder %s15, 0
      %p101 = por %p99, %p100
      %p102 = scmp.ne.s32.totalorder %s91, %s94
      %p103 = scmp.eq.s32.totalorder %s20, 5
      %p104 = por %p102, %p103
      %p105 = scmp.ne.s32.totalorder %s94, %s95
      %p106 = scmp.eq.s32.totalorder %s20, 0
      %p107 = por %p105, %p106
      %p108 = scmp.ne.s32.totalorder %s94, %s95
      %p109 = scmp.eq.s32.totalorder %s21, 5
      %p110 = por %p108, %p109
      %p112 = scmp.ne.s32.totalorder %s95, %s111
      %p113 = scmp.eq.s32.totalorder %s21, 0
      %p114 = por %p112, %p113
      %s115 = ssub.s32 %s22, %s34
      %p116 = scmp.eq.s32.totalorder %s115, 0
      %s118 = sadd.s32 %s117, 1
      %s119 = scalar_select %p116, %s117, %s118
      %p122 = pneg %p116
      %p123 = scmp.eq.s32.totalorder %s15, 5
      %p124 = por %p122, %p123
      %p125 = scmp.ne.s32.totalorder %s117, %s120
      %p126 = scmp.eq.s32.totalorder %s15, 0
      %p127 = por %p125, %p126
      %p128 = scmp.ne.s32.totalorder %s117, %s120
      %p129 = scmp.eq.s32.totalorder %s20, 5
      %p130 = por %p128, %p129
      %p131 = scmp.ne.s32.totalorder %s120, %s121
      %p132 = scmp.eq.s32.totalorder %s20, 0
      %p133 = por %p131, %p132
      %p134 = scmp.ne.s32.totalorder %s120, %s121
      %p135 = scmp.eq.s32.totalorder %s21, 5
      %p136 = por %p134, %p135
      %p138 = scmp.ne.s32.totalorder %s121, %s137
      %p139 = scmp.eq.s32.totalorder %s21, 0
      %p140 = por %p138, %p139
      %s141 = ssub.s32 %s22, %s34
      %p142 = scmp.eq.s32.totalorder %s141, 0
      %s144 = sadd.s32 %s143, 1
      %s145 = scalar_select %p142, %s143, %s144
      %p148 = pneg %p142
      %p149 = scmp.eq.s32.totalorder %s15, 5
      %p150 = por %p148, %p149
      %p151 = scmp.ne.s32.totalorder %s143, %s146
      %p152 = scmp.eq.s32.totalorder %s15, 0
      %p153 = por %p151, %p152
      %p154 = scmp.ne.s32.totalorder %s143, %s146
      %p155 = scmp.eq.s32.totalorder %s20, 5
      %p156 = por %p154, %p155
      %p157 = scmp.ne.s32.totalorder %s146, %s147
      %p158 = scmp.eq.s32.totalorder %s20, 0
      %p159 = por %p157, %p158
      %p160 = scmp.ne.s32.totalorder %s146, %s147
      %p161 = scmp.eq.s32.totalorder %s21, 5
      %p162 = por %p160, %p161
      %p164 = scmp.ne.s32.totalorder %s147, %s163
      %p165 = scmp.eq.s32.totalorder %s21, 0
      %p166 = por %p164, %p165
      %s167 = ssub.s32 %s22, %s34
      %p168 = scmp.eq.s32.totalorder %s167, 0
      %s170 = sadd.s32 %s169, 1
      %s171 = scalar_select %p168, %s169, %s170
      %p174 = pneg %p168
      %p175 = scmp.eq.s32.totalorder %s15, 5
      %p176 = por %p174, %p175
      %p177 = scmp.ne.s32.totalorder %s169, %s172
      %p178 = scmp.eq.s32.totalorder %s15, 0
      %p179 = por %p177, %p178
      %p180 = scmp.ne.s32.totalorder %s169, %s172
      %p181 = scmp.eq.s32.totalorder %s20, 5
      %p182 = por %p180, %p181
      %p183 = scmp.ne.s32.totalorder %s172, %s173
      %p184 = scmp.eq.s32.totalorder %s20, 0
      %p185 = por %p183, %p184
      %p186 = scmp.ne.s32.totalorder %s172, %s173
      %p187 = scmp.eq.s32.totalorder %s21, 5
      %p188 = por %p186, %p187
      %p190 = scmp.ne.s32.totalorder %s173, %s189
      %p191 = scmp.eq.s32.totalorder %s21, 0
      %p192 = por %p190, %p191
      %p193 = scmp.le.s32.totalorder 1, %s15
      %p194 = scmp.lt.s32.totalorder %s15, 7
      %p195 = pnand %p193, %p194
      %p196 = pneg %p195
      // Predicated region
      $region9: #{tpu_custom_call.1} parent=5 // pred_check
        _
      $region10: #{tpu_custom_call.1} parent=5 // pred_check_branch
        %198 = sbr.rel (%p195) target = $region12
      $region11: #{tpu_custom_call.1} parent=5 // pred_region
        %s199 = ssub.s32 %s15, 1
      $region12: #{tpu_custom_call.1} parent=5 // pred_fallthru
        _
      %p200 = scmp.lt.s32.totalorder %s15, 6
      // Predicated region
      $region13: #{tpu_custom_call.1} parent=5 // pred_check
        %p201 = pneg %p200
      $region14: #{tpu_custom_call.1} parent=5 // pred_check_branch
        %203 = sbr.rel (%p201) target = $region16
      $region15: #{tpu_custom_call.1} parent=5 // pred_region
        // Predicated region
        $region17: #{tpu_custom_call.1} parent=15 // pred_check
          %p204 = pneg %p49
        $region18: #{tpu_custom_call.1} parent=15 // pred_check_branch
          %206 = sbr.rel (%p204) target = $region20
        $region19: #{tpu_custom_call.1} parent=15 // pred_region
          %s207 = sand.u32 %s39, 1
          %s208 = scalar_lea.sflag [#allocation5], %s207
          %s209 = sand.u32 %s39, 1
          %s210 = smul.addr %s209, 8
          %s211 = scalar_lea.vmem [#allocation4], %s210
          %s213 = ssub.s32 128, 128
          %214 = vsyncadd %s208, %s213
          %s215 = smul.addr %s22, 3
          %s216 = sadd.s32 %s23, %s215
          %s217 = smul.addr %s216, 128
          %s218 = scalar_lea.hbm %s0, %s217
          %s220 = sshll.u32 %s211, 4
          %s221 = int_to_ptr.vmem [resolvable:$true] %s220
          %223 = dma.hbm_to_vmem [thread:$0]  %s218, 128, %s221, %s208
        $region20: #{tpu_custom_call.1} parent=15 // pred_fallthru
          _
      $region16: #{tpu_custom_call.1} parent=5 // pred_fallthru
        _
      %p224 = scmp.le.s32.totalorder 1, %s15
      %p225 = scmp.lt.s32.totalorder %s15, 7
      %p226 = pnand %p224, %p225
      %p227 = pneg %p226
      // Predicated region
      $region21: #{tpu_custom_call.1} parent=5 // pred_check
        _
      $region22: #{tpu_custom_call.1} parent=5 // pred_check_branch
        %229 = sbr.rel (%p226) target = $region24
      $region23: #{tpu_custom_call.1} parent=5 // pred_region
        %s230 = ssub.s32 %s15, 1
        %s231 = sand.u32 %s42, 1
        %s232 = scalar_lea.sflag [#allocation5], %s231
        %s233 = sand.u32 %s42, 1
        %s234 = smul.addr %s233, 8
        %s235 = scalar_lea.vmem [#allocation4], %s234
        // Predicated region
        $region25: #{tpu_custom_call.1} parent=23 // pred_check
          %p236 = pneg %p55
        $region26: #{tpu_custom_call.1} parent=23 // pred_check_branch
          %238 = sbr.rel (%p236) target = $region28
        $region27: #{tpu_custom_call.1} parent=23 // pred_region
          %239 = dma.done %s232, 128
        $region28: #{tpu_custom_call.1} parent=23 // pred_fallthru
          _
        %s240 = sand.u32 %s42, 1
        %s241 = scalar_lea.sflag [#allocation5], %s240
        %s242 = sand.u32 %s42, 1
        %s243 = smul.addr %s242, 8
        %s244 = scalar_lea.vmem [#allocation4], %s243
        %p245 = pneg %p55
        %p246 = pneg %p52
        %p247 = pneg %p81
        %p248 = pneg %p78
        %p249 = scmp.lt.s32.totalorder %s24, 1
        %s250 = scalar_select %p249, %s24, 1
        %s251 = smul.addr %s250, 8
        %s252 = scalar_lea.vmem %s1, %s251
        %p253 = pneg %p107
        %p254 = pneg %p104
        %p255 = scmp.lt.s32.totalorder %s24, 1
        %s256 = scalar_select %p255, %s24, 1
        %s257 = smul.addr %s256, 8
        %s258 = scalar_lea.vmem %s2, %s257
        %p259 = pneg %p133
        %p260 = pneg %p130
        %p261 = scmp.lt.s32.totalorder %s24, 1
        %s262 = scalar_select %p261, %s24, 1
        %s263 = smul.addr %s262, 8
        %s264 = scalar_lea.vmem %s3, %s263
        %p265 = pneg %p159
        %p266 = pneg %p156
        %p267 = scmp.lt.s32.totalorder %s24, 1
        %s268 = scalar_select %p267, %s24, 1
        %s269 = smul.addr %s268, 8
        %s270 = scalar_lea.vmem %s4, %s269
        %p271 = pneg %p185
        %p272 = pneg %p182
        %p273 = scmp.lt.s32.totalorder %s24, 1
        %s274 = scalar_select %p273, %s24, 1
        %s275 = smul.addr %s274, 8
        %s276 = scalar_lea.vmem %s5, %s275
        %p277 = scmp.lt.s32.totalorder %s24, 1
        %s278 = scalar_select %p277, %s24, 1
        %s279 = smul.addr %s278, 8
        %s280 = scalar_lea.vmem %s1, %s279
        %p281 = scmp.lt.s32.totalorder %s24, 1
        %s282 = scalar_select %p281, %s24, 1
        %s283 = smul.addr %s282, 8
        %s284 = scalar_lea.vmem %s2, %s283
        %p285 = scmp.lt.s32.totalorder %s24, 1
        %s286 = scalar_select %p285, %s24, 1
        %s287 = smul.addr %s286, 8
        %s288 = scalar_lea.vmem %s3, %s287
        %p289 = scmp.lt.s32.totalorder %s24, 1
        %s290 = scalar_select %p289, %s24, 1
        %s291 = smul.addr %s290, 8
        %s292 = scalar_lea.vmem %s4, %s291
        %p293 = scmp.lt.s32.totalorder %s24, 1
        %s294 = scalar_select %p293, %s24, 1
        %s295 = smul.addr %s294, 8
        %s296 = scalar_lea.vmem %s5, %s295
        %v297 = vld [vmem:[%s235] sm:$0xff]
        %p298 = scmp.eq.s32.totalorder %s25, 0
        // Predicated region
        $region29: #{tpu_custom_call.1} parent=23 // pred_check
          %p299 = pneg %p298
        $region30: #{tpu_custom_call.1} parent=23 // pred_check_branch
          %301 = sbr.rel (%p299) target = $region32
        $region31: #{tpu_custom_call.1} parent=23 // pred_region
          %vm302 = vcmask 7168
          %303 = vst.msk [vmem:[#allocation2] sm:$0xff] %vm302, %v297
          %304 = vst.msk [vmem:[%s280] sm:$0xff] %vm302, 0.0
          %305 = vst.msk [vmem:[%s284] sm:$0xff] %vm302, 0.0
          %306 = vst.msk [vmem:[%s288] sm:$0xff] %vm302, 0.0
          %307 = vst.msk [vmem:[%s292] sm:$0xff] %vm302, -inf
          %308 = vst.msk [vmem:[%s296] sm:$0xff] %vm302, inf
        $region32: #{tpu_custom_call.1} parent=23 // pred_fallthru
          _
        %p309 = scmp.ne.s32.totalorder %s25, 2
        // Predicated region
        $region33: #{tpu_custom_call.1} parent=23 // pred_check
          %p310 = pneg %p309
        $region34: #{tpu_custom_call.1} parent=23 // pred_check_branch
          %312 = sbr.rel (%p310) target = $region36
        $region35: #{tpu_custom_call.1} parent=23 // pred_region
          %v313 = vld [vmem:[#allocation2] sm:$0xff]
          %315 = vset.pattern.permute.xlu0 0
          %316 = vperm.xlu0 %315, %v313
          %v317 = vpop.permute.xlu0 %316
          %v319 = vsub.f32 %v297, %v317
          %v320 = vld [vmem:[%s280] sm:$0xff]
          %321 = vadd.xlane.f32.xlu0 %v319
          %v322 = vpop.xlane.xlu0 %321
          %v323 = vadd.f32 %v320, %v322
          %vm324 = vcmask 7168
          %325 = vst.msk [vmem:[%s280] sm:$0xff] %vm324, %v323
          %v326 = vld [vmem:[%s284] sm:$0xff]
          %v327 = vmul.f32 %v319, %v319
          %328 = vadd.xlane.f32.xlu0 %v327
          %v329 = vpop.xlane.xlu0 %328
          %v330 = vadd.f32 %v326, %v329
          %331 = vst.msk [vmem:[%s284] sm:$0xff] %vm324, %v330
          %v332 = vld [vmem:[%s292] sm:$0xff]
          %333 = vmax.xlane.f32.xlu0 %v297
          %v334 = vpop.xlane.xlu0 %333
          %v335 = vmax.f32 %v332, %v334
          %336 = vst.msk [vmem:[%s292] sm:$0xff] %vm324, %v335
          %v337 = vld [vmem:[%s296] sm:$0xff]
          %338 = vmin.xlane.f32.xlu0 %v297
          %v339 = vpop.xlane.xlu0 %338
          %v340 = vmin.f32 %v337, %v339
          %341 = vst.msk [vmem:[%s296] sm:$0xff] %vm324, %v340
          %342 = vrot.lane.b32.xlu0 %v297, 1
          %v343 = vpop.permute.xlu0 %342
          %v344 = vsub.f32 %v297, %v343
          %v345 = vand.u32 2147483647, %v344
          %v346 = vld [vmem:[%s288] sm:$0xff]
          %347 = vadd.xlane.f32.xlu0 %v345
          %v348 = vpop.xlane.xlu0 %347
          %350 = vrot.lane.b32.xlu0 %v297, 1
          %v351 = vpop.permute.xlu0 %350
          %v353 = vsub.f32 %v297, %v351
          %v354 = vand.u32 2147483647, %v353
          %v355 = vsub.f32 %v348, %v354
          %v356 = vadd.f32 %v346, %v355
          %357 = vst.msk [vmem:[%s288] sm:$0xff] %vm324, %v356
          %p358 = scmp.gt.s32.totalorder %s25, 0
          // Predicated region
          $region37: #{tpu_custom_call.1} parent=35 // pred_check
            %p359 = pneg %p358
          $region38: #{tpu_custom_call.1} parent=35 // pred_check_branch
            %361 = sbr.rel (%p359) target = $region40
          $region39: #{tpu_custom_call.1} parent=35 // pred_region
            %v362 = vld [vmem:[%s288] sm:$0xff]
            %v363 = vld [vmem:[#allocation3] sm:$0xff]
            %v364 = vsub.f32 %v297, %v363
            %v365 = vand.u32 2147483647, %v364
            %v366 = vadd.f32 %v362, %v365
            %367 = vst.msk [vmem:[%s288] sm:$0xff] %vm324, %v366
          $region40: #{tpu_custom_call.1} parent=35 // pred_fallthru
            _
          %368 = vst.msk [vmem:[#allocation3] sm:$0xff] %vm324, %v351
        $region36: #{tpu_custom_call.1} parent=23 // pred_fallthru
          _
        %p369 = scmp.eq.s32.totalorder %s25, 2
        // Predicated region
        $region41: #{tpu_custom_call.1} parent=23 // pred_check
          %p370 = pneg %p369
        $region42: #{tpu_custom_call.1} parent=23 // pred_check_branch
          %372 = sbr.rel (%p370) target = $region44
        $region43: #{tpu_custom_call.1} parent=23 // pred_region
          %v373 = vlaneseq
          %v374 = vand.u32 %v373, 127
          %vm375 = vcmp.lt.s32.totalorder %v374, 44
          %v376 = vld [vmem:[#allocation2] sm:$0xff]
          %378 = vset.pattern.permute.xlu0 0
          %379 = vperm.xlu0 %378, %v376
          %v380 = vpop.permute.xlu0 %379
          %v382 = vsub.f32 %v297, %v380
          %v383 = vsel %vm375, %v382, 0.0
          %v384 = vld [vmem:[%s280] sm:$0xff]
          %385 = vadd.xlane.f32.xlu0 %v383
          %v386 = vpop.xlane.xlu0 %385
          %v387 = vadd.f32 %v384, %v386
          %vm388 = vcmask 7168
          %389 = vst.msk [vmem:[%s280] sm:$0xff] %vm388, %v387
          %v390 = vld [vmem:[%s284] sm:$0xff]
          %v391 = vmul.f32 %v383, %v383
          %392 = vadd.xlane.f32.xlu0 %v391
          %v393 = vpop.xlane.xlu0 %392
          %v394 = vadd.f32 %v390, %v393
          %395 = vst.msk [vmem:[%s284] sm:$0xff] %vm388, %v394
          %v396 = vld [vmem:[%s292] sm:$0xff]
          %v397 = vsel %vm375, %v297, -inf
          %398 = vmax.xlane.f32.xlu0 %v397
          %v399 = vpop.xlane.xlu0 %398
          %v400 = vmax.f32 %v396, %v399
          %401 = vst.msk [vmem:[%s292] sm:$0xff] %vm388, %v400
          %v402 = vld [vmem:[%s296] sm:$0xff]
          %v403 = vsel %vm375, %v297, inf
          %404 = vmin.xlane.f32.xlu0 %v403
          %v405 = vpop.xlane.xlu0 %404
          %v406 = vmin.f32 %v402, %v405
          %407 = vst.msk [vmem:[%s296] sm:$0xff] %vm388, %v406
          %408 = vrot.lane.b32.xlu0 %v297, 1
          %v409 = vpop.permute.xlu0 %408
          %v410 = vsub.f32 %v297, %v409
          %v411 = vand.u32 2147483647, %v410
          %vm412 = vcmp.ge.s32.totalorder %v374, 1
          %vm413 = vmand %vm412, %vm375
          %v414 = vld [vmem:[%s288] sm:$0xff]
          %v415 = vsel %vm413, %v411, 0.0
          %416 = vadd.xlane.f32.xlu0 %v415
          %v417 = vpop.xlane.xlu0 %416
          %v418 = vadd.f32 %v414, %v417
          %419 = vst.msk [vmem:[%s288] sm:$0xff] %vm388, %v418
          %p420 = scmp.gt.s32.totalorder %s25, 0
          // Predicated region
          $region45: #{tpu_custom_call.1} parent=43 // pred_check
            %p421 = pneg %p420
          $region46: #{tpu_custom_call.1} parent=43 // pred_check_branch
            %423 = sbr.rel (%p421) target = $region48
          $region47: #{tpu_custom_call.1} parent=43 // pred_region
            %v424 = vld [vmem:[%s288] sm:$0xff]
            %v425 = vld [vmem:[#allocation3] sm:$0xff]
            %v426 = vsub.f32 %v297, %v425
            %v427 = vand.u32 2147483647, %v426
            %v428 = vadd.f32 %v424, %v427
            %429 = vst.msk [vmem:[%s288] sm:$0xff] %vm388, %v428
          $region48: #{tpu_custom_call.1} parent=43 // pred_fallthru
            _
        $region44: #{tpu_custom_call.1} parent=23 // pred_fallthru
          _
        %p430 = scmp.lt.s32.totalorder %s24, 1
        %s431 = scalar_select %p430, %s24, 1
        %s432 = smul.addr %s431, 8
        %s433 = scalar_lea.vmem %s1, %s432
        %p434 = scmp.lt.s32.totalorder %s24, 1
        %s435 = scalar_select %p434, %s24, 1
        %s436 = smul.addr %s435, 8
        %s437 = scalar_lea.vmem %s2, %s436
        %p438 = scmp.lt.s32.totalorder %s24, 1
        %s439 = scalar_select %p438, %s24, 1
        %s440 = smul.addr %s439, 8
        %s441 = scalar_lea.vmem %s3, %s440
        %p442 = scmp.lt.s32.totalorder %s24, 1
        %s443 = scalar_select %p442, %s24, 1
        %s444 = smul.addr %s443, 8
        %s445 = scalar_lea.vmem %s4, %s444
        %p446 = scmp.lt.s32.totalorder %s24, 1
        %s447 = scalar_select %p446, %s24, 1
        %s448 = smul.addr %s447, 8
        %s449 = scalar_lea.vmem %s5, %s448
        // Predicated region
        $region49: #{tpu_custom_call.1} parent=23 // pred_check
          %p450 = pneg %p78
        $region50: #{tpu_custom_call.1} parent=23 // pred_check_branch
          %452 = sbr.rel (%p450) target = $region52
        $region51: #{tpu_custom_call.1} parent=23 // pred_region
          _
        $region52: #{tpu_custom_call.1} parent=23 // pred_fallthru
          _
        // Predicated region
        $region53: #{tpu_custom_call.1} parent=23 // pred_check
          %p453 = pneg %p104
        $region54: #{tpu_custom_call.1} parent=23 // pred_check_branch
          %455 = sbr.rel (%p453) target = $region56
        $region55: #{tpu_custom_call.1} parent=23 // pred_region
          _
        $region56: #{tpu_custom_call.1} parent=23 // pred_fallthru
          _
        // Predicated region
        $region57: #{tpu_custom_call.1} parent=23 // pred_check
          %p456 = pneg %p130
        $region58: #{tpu_custom_call.1} parent=23 // pred_check_branch
          %458 = sbr.rel (%p456) target = $region60
        $region59: #{tpu_custom_call.1} parent=23 // pred_region
          _
        $region60: #{tpu_custom_call.1} parent=23 // pred_fallthru
          _
        // Predicated region
        $region61: #{tpu_custom_call.1} parent=23 // pred_check
          %p459 = pneg %p156
        $region62: #{tpu_custom_call.1} parent=23 // pred_check_branch
          %461 = sbr.rel (%p459) target = $region64
        $region63: #{tpu_custom_call.1} parent=23 // pred_region
          _
        $region64: #{tpu_custom_call.1} parent=23 // pred_fallthru
          _
        // Predicated region
        $region65: #{tpu_custom_call.1} parent=23 // pred_check
          %p462 = pneg %p182
        $region66: #{tpu_custom_call.1} parent=23 // pred_check_branch
          %464 = sbr.rel (%p462) target = $region68
        $region67: #{tpu_custom_call.1} parent=23 // pred_region
          _
        $region68: #{tpu_custom_call.1} parent=23 // pred_fallthru
          _
      $region24: #{tpu_custom_call.1} parent=5 // pred_fallthru
        _
      %p465 = scmp.le.s32.totalorder 2, %s15
      // Predicated region
      $region69: #{tpu_custom_call.1} parent=5 // pred_check
        %p466 = pneg %p465
      $region70: #{tpu_custom_call.1} parent=5 // pred_check_branch
        %468 = sbr.rel (%p466) target = $region72
      $region71: #{tpu_custom_call.1} parent=5 // pred_region
        %s469 = ssub.s32 %s15, 2
        // Predicated region
        $region73: #{tpu_custom_call.1} parent=71 // pred_check
          %p470 = pneg %p84
        $region74: #{tpu_custom_call.1} parent=71 // pred_check_branch
          %472 = sbr.rel (%p470) target = $region76
        $region75: #{tpu_custom_call.1} parent=71 // pred_region
          %p473 = scmp.lt.s32.totalorder %s26, 1
          %s474 = scalar_select %p473, %s26, 1
          %s475 = smul.addr %s474, 8
          %s476 = scalar_lea.vmem %s1, %s475
        $region76: #{tpu_custom_call.1} parent=71 // pred_fallthru
          _
        // Predicated region
        $region77: #{tpu_custom_call.1} parent=71 // pred_check
          %p477 = pneg %p110
        $region78: #{tpu_custom_call.1} parent=71 // pred_check_branch
          %479 = sbr.rel (%p477) target = $region80
        $region79: #{tpu_custom_call.1} parent=71 // pred_region
          %p480 = scmp.lt.s32.totalorder %s26, 1
          %s481 = scalar_select %p480, %s26, 1
          %s482 = smul.addr %s481, 8
          %s483 = scalar_lea.vmem %s2, %s482
        $region80: #{tpu_custom_call.1} parent=71 // pred_fallthru
          _
        // Predicated region
        $region81: #{tpu_custom_call.1} parent=71 // pred_check
          %p484 = pneg %p136
        $region82: #{tpu_custom_call.1} parent=71 // pred_check_branch
          %486 = sbr.rel (%p484) target = $region84
        $region83: #{tpu_custom_call.1} parent=71 // pred_region
          %p487 = scmp.lt.s32.totalorder %s26, 1
          %s488 = scalar_select %p487, %s26, 1
          %s489 = smul.addr %s488, 8
          %s490 = scalar_lea.vmem %s3, %s489
        $region84: #{tpu_custom_call.1} parent=71 // pred_fallthru
          _
        // Predicated region
        $region85: #{tpu_custom_call.1} parent=71 // pred_check
          %p491 = pneg %p162
        $region86: #{tpu_custom_call.1} parent=71 // pred_check_branch
          %493 = sbr.rel (%p491) target = $region88
        $region87: #{tpu_custom_call.1} parent=71 // pred_region
          %p494 = scmp.lt.s32.totalorder %s26, 1
          %s495 = scalar_select %p494, %s26, 1
          %s496 = smul.addr %s495, 8
          %s497 = scalar_lea.vmem %s4, %s496
        $region88: #{tpu_custom_call.1} parent=71 // pred_fallthru
          _
        // Predicated region
        $region89: #{tpu_custom_call.1} parent=71 // pred_check
          %p498 = pneg %p188
        $region90: #{tpu_custom_call.1} parent=71 // pred_check_branch
          %500 = sbr.rel (%p498) target = $region92
        $region91: #{tpu_custom_call.1} parent=71 // pred_region
          %p501 = scmp.lt.s32.totalorder %s26, 1
          %s502 = scalar_select %p501, %s26, 1
          %s503 = smul.addr %s502, 8
          %s504 = scalar_lea.vmem %s5, %s503
        $region92: #{tpu_custom_call.1} parent=71 // pred_fallthru
          _
      $region72: #{tpu_custom_call.1} parent=5 // pred_fallthru
        _
    $region6: #{tpu_custom_call.1} parent=1 // loop_footer
      %s19 = sadd.s32 1, %s15
    $region7: #{tpu_custom_call.1} parent=1 // loop_footer_branch
      %14 = sbr.rel target = $region3
    $region8: #{tpu_custom_call.1} parent=1 // loop_exit
      _
    %505 = vsyncpa [#allocation5], 1
    %s506 = scalar_lea.sflag [#allocation5], 1
    %507 = vsyncpa %s506, 1

</llo_original>
